<compile_context>
chip_gen: v7x
topology: tpu7x:2x2x1
jax: 0.10.0
libtpu: 0.0.40
codegen_flags: <defaults>
</compile_context>

<pallas_src>
import jax
import jax.numpy as jnp
from jax.experimental import pallas as pl
from jax.experimental.pallas import tpu as pltpu

EPS = 1e-5


def _round_up(v, m):
    return ((v + m - 1) // m) * m


def _is_v7x():
    try:
        kind = jax.devices()[0].device_kind.lower()
        return ("v7" in kind) or ("7x" in kind)
    except Exception:
        return False


def _physical_vmem_bytes():
    try:
        cap = getattr(pltpu.get_tpu_info(), "vmem_capacity_bytes", None)
        if cap:
            return int(cap)
    except Exception:
        pass
    # Fallback keyed on device kind (64 MiB per TensorCore on v7x, 128 MiB else).
    return (64 << 20) if _is_v7x() else (128 << 20)


def _num_tensorcores():
    return 2 if _is_v7x() else 1


def _tile_plan(rows, hw, itemsize, vmem_cap, num_tc):
    """Pick (row_block, hw_block, vmem_limit_bytes) for the streaming kernel."""
    sub = max(8, 32 // itemsize)  # sublane packing: 8 f32 / 16 bf16 / 32 int8
    # 3/4 of physical VMEM, but always leave >= 8 MiB headroom (matters on the
    # 64 MiB v7x part for Mosaic internal scratch).
    vmem_limit = min((vmem_cap * 3) // 4, vmem_cap - (8 << 20))
    x_budget = vmem_limit // 2  # slack for compiler scratch / pipeline state

    hw_pad = _round_up(hw, 128)

    def per_row_bytes(hw_blk):
        # in + out tiles double-buffered (4 x itemsize) + ~2 f32 temp tiles for
        # the upcast / x*x sweep, plus the (row, 1) side buffers (w, b, mean,
        # inv, accumulators, s/t temps) which pad to 128 lanes (~0.5 KiB each).
        return hw_blk * (4 * itemsize + 8) + 8 * 1024

    # Prefer a single pass over the whole (padded) spatial extent.
    hw_block = hw_pad
    max_rows = (x_budget // per_row_bytes(hw_block)) // sub * sub
    if max_rows < sub:
        # h*w too large for a single-block reduction on this chip: split the
        # lane axis (two-pass stats + apply pipeline).
        target_rows = max(sub, 256)
        hw_block = (x_budget // target_rows - 8 * 1024) // (4 * itemsize + 8)
        hw_block = max(128, (hw_block // 128) * 128)
        hw_block = min(hw_block, hw_pad)
        max_rows = (x_budget // per_row_bytes(hw_block)) // sub * sub
        max_rows = max(max_rows, sub)

    # Cap the row block so the row axis has ~4 steps per TensorCore (hides the
    # DMA prologue / compute tail, balances megacore), but never shrink a tile
    # below ~512 rows just to add steps.
    rows_cap = _round_up(rows, sub)
    desired = _round_up(pl.cdiv(rows, 4 * num_tc), sub)
    desired = max(desired, min(512, rows_cap))
    row_block = max(sub, min(max_rows, desired, rows_cap))
    return row_block, hw_block, int(vmem_limit)


def _make_single_pass_kernel(inv_n, eps):
    def kernel(x_ref, w_ref, b_ref, o_ref):
        # x_ref / o_ref: (row_block, hw_pad) tile; w_ref / b_ref: (row_block, 1).
        x = x_ref[...].astype(jnp.float32)
        ssum = jnp.sum(x, axis=-1, keepdims=True)
        ssq = jnp.sum(x * x, axis=-1, keepdims=True)
        mean = ssum * inv_n
        var = jnp.maximum(ssq * inv_n - mean * mean, 0.0)
        inv = jax.lax.rsqrt(var + eps)
        s = inv * w_ref[...]           # (row_block, 1)
        t = b_ref[...] - mean * s      # (row_block, 1)
        o_ref[...] = (x * s + t).astype(o_ref.dtype)

    return kernel


def _make_stats_kernel(inv_n, eps):
    def kernel(x_ref, mean_ref, inv_ref, sum_acc, sq_acc):
        j = pl.program_id(1)

        @pl.when(j == 0)
        def _():
            sum_acc[...] = jnp.zeros_like(sum_acc)
            sq_acc[...] = jnp.zeros_like(sq_acc)

        x = x_ref[...].astype(jnp.float32)
        sum_acc[...] += jnp.sum(x, axis=-1, keepdims=True)
        sq_acc[...] += jnp.sum(x * x, axis=-1, keepdims=True)

        @pl.when(j == pl.num_programs(1) - 1)
        def _():
            mean = sum_acc[...] * inv_n
            var = jnp.maximum(sq_acc[...] * inv_n - mean * mean, 0.0)
            mean_ref[...] = mean
            inv_ref[...] = jax.lax.rsqrt(var + eps)

    return kernel


def _apply_kernel(x_ref, mean_ref, inv_ref, w_ref, b_ref, o_ref):
    s = inv_ref[...] * w_ref[...]
    t = b_ref[...] - mean_ref[...] * s
    o_ref[...] = (x_ref[...].astype(jnp.float32) * s + t).astype(o_ref.dtype)


def adaptive_instance_norm_2d(x, weight, bias, *, eps=EPS, row_block=None,
                              hw_block=None):
    """x: (b, c, h, w); weight, bias: (b*c,) per-instance-channel affine."""
    b, c, h, w = x.shape
    rows = b * c
    hw = h * w
    assert weight.shape == (rows,) and bias.shape == (rows,)
    inv_n = 1.0 / float(hw)  # compile-time reciprocal: no in-kernel divides

    itemsize = jnp.dtype(x.dtype).itemsize
    vmem_cap = _physical_vmem_bytes()
    num_tc = _num_tensorcores()
    auto_rb, auto_hwb, vmem_limit = _tile_plan(rows, hw, itemsize, vmem_cap, num_tc)
    if row_block is None:
        row_block = auto_rb
    if hw_block is None:
        hw_block = auto_hwb
    assert hw_block % 128 == 0

    # Zero-pad the lane axis to a multiple of hw_block (lane-dense stores; zero
    # pads do not perturb sum / sumsq, and inv_n stays 1/(h*w)).
    hw_padded = _round_up(hw, hw_block)
    num_hw_chunks = hw_padded // hw_block
    num_row_blocks = pl.cdiv(rows, row_block)

    x2 = x.reshape(rows, hw)
    if hw_padded != hw:
        x2 = jnp.pad(x2, ((0, 0), (0, hw_padded - hw)))
    w2 = weight.astype(jnp.float32).reshape(rows, 1)
    b2 = bias.astype(jnp.float32).reshape(rows, 1)

    if num_hw_chunks == 1:
        # Single-pass: whole spatial extent resident per row tile.
        out = pl.pallas_call(
            _make_single_pass_kernel(inv_n, eps),
            out_shape=jax.ShapeDtypeStruct((rows, hw_padded), x.dtype),
            grid_spec=pltpu.PrefetchScalarGridSpec(
                num_scalar_prefetch=0,
                grid=(num_row_blocks,),
                in_specs=[
                    pl.BlockSpec((row_block, hw_padded), lambda i: (i, 0)),
                    pl.BlockSpec((row_block, 1), lambda i: (i, 0)),
                    pl.BlockSpec((row_block, 1), lambda i: (i, 0)),
                ],
                out_specs=pl.BlockSpec((row_block, hw_padded), lambda i: (i, 0)),
            ),
            compiler_params=pltpu.CompilerParams(
                dimension_semantics=("parallel",),
                vmem_limit_bytes=vmem_limit,
            ),
        )(x2, w2, b2)
    else:
        # Two-pass: stats (running sum / sumsq over hw chunks), then apply.
        mean, inv = pl.pallas_call(
            _make_stats_kernel(inv_n, eps),
            out_shape=(
                jax.ShapeDtypeStruct((rows, 1), jnp.float32),
                jax.ShapeDtypeStruct((rows, 1), jnp.float32),
            ),
            grid_spec=pltpu.PrefetchScalarGridSpec(
                num_scalar_prefetch=0,
                grid=(num_row_blocks, num_hw_chunks),
                in_specs=[
                    pl.BlockSpec((row_block, hw_block), lambda i, j: (i, j)),
                ],
                out_specs=[
                    pl.BlockSpec((row_block, 1), lambda i, j: (i, 0)),
                    pl.BlockSpec((row_block, 1), lambda i, j: (i, 0)),
                ],
                scratch_shapes=[
                    pltpu.VMEM((row_block, 1), jnp.float32),
                    pltpu.VMEM((row_block, 1), jnp.float32),
                ],
            ),
            compiler_params=pltpu.CompilerParams(
                dimension_semantics=("parallel", "arbitrary"),
                vmem_limit_bytes=vmem_limit,
            ),
        )(x2)

        out = pl.pallas_call(
            _apply_kernel,
            out_shape=jax.ShapeDtypeStruct((rows, hw_padded), x.dtype),
            grid_spec=pltpu.PrefetchScalarGridSpec(
                num_scalar_prefetch=0,
                grid=(num_row_blocks, num_hw_chunks),
                in_specs=[
                    pl.BlockSpec((row_block, hw_block), lambda i, j: (i, j)),
                    pl.BlockSpec((row_block, 1), lambda i, j: (i, 0)),
                    pl.BlockSpec((row_block, 1), lambda i, j: (i, 0)),
                    pl.BlockSpec((row_block, 1), lambda i, j: (i, 0)),
                    pl.BlockSpec((row_block, 1), lambda i, j: (i, 0)),
                ],
                out_specs=pl.BlockSpec((row_block, hw_block), lambda i, j: (i, j)),
            ),
            compiler_params=pltpu.CompilerParams(
                dimension_semantics=("parallel", "arbitrary"),
                vmem_limit_bytes=vmem_limit,
            ),
        )(x2, mean, inv, w2, b2)

    if hw_padded != hw:
        out = out[:, :hw]
    return out.reshape(b, c, h, w)


def _reference(x, weight, bias, eps=EPS):
    b, c, h, w = x.shape
    xr = x.reshape(b * c, h * w).astype(jnp.float32)
    mean = xr.mean(axis=-1, keepdims=True)
    var = ((xr - mean) ** 2).mean(axis=-1, keepdims=True)
    out = (xr - mean) / jnp.sqrt(var + eps)
    out = out * weight[:, None] + bias[:, None]
    return out.reshape(b, c, h, w).astype(x.dtype)


if __name__ == "__main__":
    key = jax.random.PRNGKey(0)
    kx, kw, kb, kx2, kw2, kb2 = jax.random.split(key, 6)

    # Small shape consistent with the module: batch=2, channels=4, spatial=16.
    b, c, h, w = 2, 4, 16, 16
    x = jax.random.normal(kx, (b, c, h, w), dtype=jnp.float32)
    # weight/bias are assigned externally before calling AdaIN; shape (b*c,)
    # so batch_norm on the (1, b*c, h, w) view is valid.
    weight = 1.0 + 0.1 * jax.random.normal(kw, (b * c,), dtype=jnp.float32)
    bias = 0.1 * jax.random.normal(kb, (b * c,), dtype=jnp.float32)

    ref = _reference(x, weight, bias)

    # Default (single-pass) path.
    out = jax.block_until_ready(adaptive_instance_norm_2d(x, weight, bias))
    assert out.shape == (b, c, h, w)
    assert jnp.allclose(out, ref, atol=1e-4, rtol=1e-4)

    # Force the split-hw (two-pass stats + apply) path on the same input.
    out_split = jax.block_until_ready(
        adaptive_instance_norm_2d(x, weight, bias, hw_block=128))
    assert jnp.allclose(out_split, ref, atol=1e-4, rtol=1e-4)

    # Lane-padding path: h*w not a multiple of 128.
    b2_, c2_, h2_, w2_ = 2, 3, 10, 10
    x_odd = jax.random.normal(kx2, (b2_, c2_, h2_, w2_), dtype=jnp.float32)
    w_odd = 1.0 + 0.1 * jax.random.normal(kw2, (b2_ * c2_,), dtype=jnp.float32)
    bias_odd = 0.1 * jax.random.normal(kb2, (b2_ * c2_,), dtype=jnp.float32)
    out_odd = jax.block_until_ready(
        adaptive_instance_norm_2d(x_odd, w_odd, bias_odd))
    assert jnp.allclose(out_odd, _reference(x_odd, w_odd, bias_odd),
                        atol=1e-4, rtol=1e-4)

    # TODO(synk): running_mean / running_var momentum updates are intentionally
    # omitted — they do not affect the value returned by forward().
    print("KERNEL_OK")
</pallas_src>

<mosaic_0001>
module attributes {stable_mosaic.version = 11 : i64} {
  func.func @kernel(%arg0: i32, %arg1: memref<8x256xf32, #tpu.memory_space<vmem>>, %arg2: memref<8x1xf32, #tpu.memory_space<vmem>>, %arg3: memref<8x1xf32, #tpu.memory_space<vmem>>, %arg4: memref<8x256xf32, #tpu.memory_space<vmem>>) attributes {dimension_semantics = [#tpu.dimension_semantics<parallel>], iteration_bounds = array<i64: 1>, scalar_prefetch = 0 : i64, scratch_operands = 0 : i64, tpu.core_type = #tpu.core_type<tc>, window_params = [{transform_indices = @transform_0, window_bounds = array<i64: 8, 256>}, {transform_indices = @transform_1, window_bounds = array<i64: 8, 1>}, {transform_indices = @transform_2, window_bounds = array<i64: 8, 1>}, {transform_indices = @transform_3, window_bounds = array<i64: 8, 256>}]} {
    %c0 = arith.constant 0 : index
    %c0_0 = arith.constant 0 : index
    %0 = vector.load %arg1[%c0, %c0_0] : memref<8x256xf32, #tpu.memory_space<vmem>>, vector<8x256xf32>
    %cst = arith.constant dense<0.000000e+00> : vector<8xf32>
    %1 = vector.multi_reduction <add>, %0, %cst [1] : vector<8x256xf32> to vector<8xf32>
    %2 = vector.shape_cast %1 : vector<8xf32> to vector<8x1xf32>
    %3 = arith.mulf %0, %0 : vector<8x256xf32>
    %cst_1 = arith.constant dense<0.000000e+00> : vector<8xf32>
    %4 = vector.multi_reduction <add>, %3, %cst_1 [1] : vector<8x256xf32> to vector<8xf32>
    %5 = vector.shape_cast %4 : vector<8xf32> to vector<8x1xf32>
    %cst_2 = arith.constant 3.906250e-03 : f32
    %6 = vector.broadcast %cst_2 : f32 to vector<8x1xf32>
    %7 = arith.mulf %2, %6 : vector<8x1xf32>
    %cst_3 = arith.constant 3.906250e-03 : f32
    %8 = vector.broadcast %cst_3 : f32 to vector<8x1xf32>
    %9 = arith.mulf %5, %8 : vector<8x1xf32>
    %10 = arith.mulf %7, %7 : vector<8x1xf32>
    %11 = arith.subf %9, %10 : vector<8x1xf32>
    %cst_4 = arith.constant 0.000000e+00 : f32
    %12 = vector.broadcast %cst_4 : f32 to vector<8x1xf32>
    %13 = arith.maximumf %11, %12 : vector<8x1xf32>
    %cst_5 = arith.constant 9.99999974E-6 : f32
    %14 = vector.broadcast %cst_5 : f32 to vector<8x1xf32>
    %15 = arith.addf %13, %14 : vector<8x1xf32>
    %16 = math.rsqrt %15 : vector<8x1xf32>
    %c0_6 = arith.constant 0 : index
    %c0_7 = arith.constant 0 : index
    %17 = vector.load %arg2[%c0_6, %c0_7] : memref<8x1xf32, #tpu.memory_space<vmem>>, vector<8x1xf32>
    %18 = arith.mulf %16, %17 : vector<8x1xf32>
    %c0_8 = arith.constant 0 : index
    %c0_9 = arith.constant 0 : index
    %19 = vector.load %arg3[%c0_8, %c0_9] : memref<8x1xf32, #tpu.memory_space<vmem>>, vector<8x1xf32>
    %20 = arith.mulf %7, %18 : vector<8x1xf32>
    %21 = arith.subf %19, %20 : vector<8x1xf32>
    %22 = vector.broadcast %18 : vector<8x1xf32> to vector<8x256xf32>
    %23 = arith.mulf %0, %22 : vector<8x256xf32>
    %24 = vector.broadcast %21 : vector<8x1xf32> to vector<8x256xf32>
    %25 = arith.addf %23, %24 : vector<8x256xf32>
    %c0_10 = arith.constant 0 : index
    %c0_11 = arith.constant 0 : index
    %26 = vector.load %arg4[%c0_10, %c0_11] : memref<8x256xf32, #tpu.memory_space<vmem>>, vector<8x256xf32>
    tpu.vector_store %arg4[%c0_10, %c0_11], %25 {strides = array<i32>} : memref<8x256xf32, #tpu.memory_space<vmem>>, vector<8x256xf32>,
    return
  }
  func.func @transform_0(%arg0: i32) -> (i32, i32) {
    %c0_i32 = arith.constant 0 : i32
    %c0_i32_0 = arith.constant 0 : i32
    return %arg0, %c0_i32 : i32, i32
  }
  func.func @transform_1(%arg0: i32) -> (i32, i32) {
    %c0_i32 = arith.constant 0 : i32
    %c0_i32_0 = arith.constant 0 : i32
    return %arg0, %c0_i32 : i32, i32
  }
  func.func @transform_2(%arg0: i32) -> (i32, i32) {
    %c0_i32 = arith.constant 0 : i32
    %c0_i32_0 = arith.constant 0 : i32
    return %arg0, %c0_i32 : i32, i32
  }
  func.func @transform_3(%arg0: i32) -> (i32, i32) {
    %c0_i32 = arith.constant 0 : i32
    %c0_i32_0 = arith.constant 0 : i32
    return %arg0, %c0_i32 : i32, i32
  }
}

</mosaic_0001>

<llo_original>
// kernel: tpu_custom_call.1
$region0: #{tpu_custom_call.1}
  #allocation0 [shape = 'u32[]', space=smem, size = 0x4, offset = 0x4, fixed_abs, tag = 'smem constant byte address 0x4 - core index']
  #allocation1 [shape = 'u32[144,128]{1,0:T(1,128)}', space=vmem, size = 0x12000, scoped, tag = 'internal scratch']
  %s0 = inlined_call_operand.hbm [shape: f32[8,256], index: 0, kind: input, shape index: {}]
  %s1 = inlined_call_operand.hbm [shape: f32[8,1], index: 1, kind: input, shape index: {}]
  %s2 = inlined_call_operand.hbm [shape: f32[8,1], index: 2, kind: input, shape index: {}]
  %s3 = inlined_call_operand.hbm [shape: f32[8,256], index: 3, kind: output, shape index: {}]
  %s4 = sld [smem:[#allocation0]]
  $region34: #{tpu_custom_call.1} parent=0
    _
  %s6 = ssub.s32 1, %s4
  %s7 = scalar_select 0, %s6, %s4
  $region1: #{tpu_custom_call.1} parent=0
    #allocation2 [shape = 'u8[8192]{0}', space=vmem, size = 0x2000, scoped, tag = 'input window, operand 0, single buffered']
    #allocation3 [shape = 's32[1]{0}', space=sflag, size = 0x4, scoped, tag = 'scoped memory for tpu_custom_call.1']
    #allocation4 [shape = 's32[1]{0}', space=sflag, size = 0x4, scoped, tag = 'scoped memory for tpu_custom_call.1']
    #allocation5 [shape = 'u8[4096]{0}', space=vmem, size = 0x1000, scoped, tag = 'input window, operand 1, single buffered']
    #allocation6 [shape = 's32[1]{0}', space=sflag, size = 0x4, scoped, tag = 'scoped memory for tpu_custom_call.1']
    #allocation7 [shape = 'u8[4096]{0}', space=vmem, size = 0x1000, scoped, tag = 'input window, operand 2, single buffered']
    #allocation8 [shape = 'u8[8192]{0}', space=vmem, size = 0x2000, scoped, tag = 'output window, operand 0, single buffered']
    %8 = vsyncpa [#allocation3], 0
    %9 = vsyncpa [#allocation6], 0
    %10 = vsyncpa [#allocation4], 0
    // Predicated region
    $region2: #{tpu_custom_call.1} parent=1 // pred_check
      _
    $region3: #{tpu_custom_call.1} parent=1 // pred_check_branch
      %12 = sbr.rel (0) target = $region5
    $region4: #{tpu_custom_call.1} parent=1 // pred_region
      %s14 = ssub.s32 256, 256
      %15 = vsyncadd [#allocation3], %s14
      %s17 = sshll.u32 [#allocation2], 4
      %s18 = int_to_ptr.vmem [resolvable:$true] %s17
      %20 = dma.hbm_to_vmem [thread:$0]  %s0, 256, %s18, [#allocation3]
    $region5: #{tpu_custom_call.1} parent=1 // pred_fallthru
      _
    // Predicated region
    $region6: #{tpu_custom_call.1} parent=1 // pred_check
      _
    $region7: #{tpu_custom_call.1} parent=1 // pred_check_branch
      %22 = sbr.rel (0) target = $region9
    $region8: #{tpu_custom_call.1} parent=1 // pred_region
      %s24 = ssub.s32 128, 128
      %25 = vsyncadd [#allocation6], %s24
      %s27 = sshll.u32 [#allocation5], 4
      %s28 = int_to_ptr.vmem [resolvable:$true] %s27
      %30 = dma.hbm_to_vmem [thread:$0]  %s1, 128, %s28, [#allocation6]
    $region9: #{tpu_custom_call.1} parent=1 // pred_fallthru
      _
    // Predicated region
    $region10: #{tpu_custom_call.1} parent=1 // pred_check
      _
    $region11: #{tpu_custom_call.1} parent=1 // pred_check_branch
      %32 = sbr.rel (0) target = $region13
    $region12: #{tpu_custom_call.1} parent=1 // pred_region
      %s34 = ssub.s32 128, 128
      %35 = vsyncadd [#allocation6], %s34
      %s37 = sshll.u32 [#allocation7], 4
      %s38 = int_to_ptr.vmem [resolvable:$true] %s37
      %40 = dma.hbm_to_vmem [thread:$0]  %s2, 128, %s38, [#allocation6]
    $region13: #{tpu_custom_call.1} parent=1 // pred_fallthru
      _
    // Predicated region
    $region14: #{tpu_custom_call.1} parent=1 // pred_check
      _
    $region15: #{tpu_custom_call.1} parent=1 // pred_check_branch
      %42 = sbr.rel (0) target = $region17
    $region16: #{tpu_custom_call.1} parent=1 // pred_region
      %43 = dma.done [#allocation3], 256
    $region17: #{tpu_custom_call.1} parent=1 // pred_fallthru
      _
    // Predicated region
    $region18: #{tpu_custom_call.1} parent=1 // pred_check
      _
    $region19: #{tpu_custom_call.1} parent=1 // pred_check_branch
      %45 = sbr.rel (0) target = $region21
    $region20: #{tpu_custom_call.1} parent=1 // pred_region
      %46 = dma.done [#allocation6], 128
    $region21: #{tpu_custom_call.1} parent=1 // pred_fallthru
      _
    // Predicated region
    $region22: #{tpu_custom_call.1} parent=1 // pred_check
      _
    $region23: #{tpu_custom_call.1} parent=1 // pred_check_branch
      %48 = sbr.rel (0) target = $region25
    $region24: #{tpu_custom_call.1} parent=1 // pred_region
      %49 = dma.done [#allocation6], 128
    $region25: #{tpu_custom_call.1} parent=1 // pred_fallthru
      _
    %v50 = vld [vmem:[#allocation2] sm:$0xff]
    %v51 = vld [vmem:[#allocation2 + $0x8] sm:$0xff]
    %v52 = vadd.f32 %v50, %v51
    %53 = vadd.xlane.f32.xlu0 %v52
    %v54 = vpop.xlane.xlu0 %53
    %v55 = vmul.f32 %v50, %v50
    %v56 = vmul.f32 %v51, %v51
    %v57 = vadd.f32 %v55, %v56
    %58 = vadd.xlane.f32.xlu0 %v57
    %v59 = vpop.xlane.xlu0 %58
    %v60 = vmul.f32 %v54, 0.00390625
    %v61 = vmul.f32 %v59, 0.00390625
    %v62 = vmul.f32 %v60, %v60
    %v63 = vsub.f32 %v61, %v62
    %v64 = vmax.f32 %v63, 0.0
    %v65 = vadd.f32 %v64, 1e-05
    %v66 = vrsqrt.pop %v65
    %v67 = vld [vmem:[#allocation5] sm:$0xff]
    %v68 = vmul.f32 %v66, %v67
    %v69 = vld [vmem:[#allocation7] sm:$0xff]
    %v70 = vmul.f32 %v60, %v68
    %v71 = vsub.f32 %v69, %v70
    %73 = vset.pattern.permute.xlu0 0
    %74 = vperm.xlu0 %73, %v68
    %v75 = vpop.permute.xlu0 %74
    %v77 = vmul.f32 %v50, %v75
    %v78 = vmul.f32 %v51, %v75
    %80 = vset.pattern.permute.xlu0 0
    %81 = vperm.xlu0 %80, %v71
    %v82 = vpop.permute.xlu0 %81
    %v84 = vadd.f32 %v77, %v82
    %v85 = vadd.f32 %v78, %v82
    %86 = vst [vmem:[#allocation8] sm:$0xff] %v84
    %87 = vst [vmem:[#allocation8 + $0x8] sm:$0xff] %v85
    // Predicated region
    $region26: #{tpu_custom_call.1} parent=1 // pred_check
      _
    $region27: #{tpu_custom_call.1} parent=1 // pred_check_branch
      %89 = sbr.rel (0) target = $region29
    $region28: #{tpu_custom_call.1} parent=1 // pred_region
      %s91 = ssub.s32 256, 256
      %92 = vsyncadd [#allocation4], %s91
      %s94 = sshll.u32 [#allocation8], 4
      %s95 = int_to_ptr.vmem [resolvable:$true] %s94
      %97 = dma.vmem_to_hbm [thread:$0]  %s95, 256, %s3, [#allocation4]
    $region29: #{tpu_custom_call.1} parent=1 // pred_fallthru
      _
    // Predicated region
    $region30: #{tpu_custom_call.1} parent=1 // pred_check
      _
    $region31: #{tpu_custom_call.1} parent=1 // pred_check_branch
      %99 = sbr.rel (0) target = $region33
    $region32: #{tpu_custom_call.1} parent=1 // pred_region
      %100 = dma.done [#allocation4], 256
    $region33: #{tpu_custom_call.1} parent=1 // pred_fallthru
      _
    %101 = vsyncpa [#allocation3], 1
    %102 = vsyncpa [#allocation6], 1
    %103 = vsyncpa [#allocation4], 1

</llo_original>
